<compile_context>
chip_gen: v7x
topology: tpu7x:2x2x1
jax: 0.10.0
libtpu: 0.0.40
codegen_flags: <defaults>
</compile_context>

<pallas_src>
import jax
import jax.numpy as jnp
from jax.experimental import pallas as pl
from jax.experimental.pallas import tpu as pltpu

_LANE_WIDTH = 512               # lane-dense column width (multiple of 128)
_ROW_TILE = 2048                # rows per grid step -> 4 MiB f32 block
_VMEM_LIMIT_BYTES = 32 * 1024 * 1024   # covers 2 bufs x (in+out) x 4 MiB = 16 MiB
_MIN_PALLAS_ELEMENTS = 64 * 1024


def _affine_kernel(w_ref, b_ref, x_ref, o_ref):
    # w_ref / b_ref: (1, 1) scalars in SMEM.
    # x_ref / o_ref: (block_rows, _LANE_WIDTH) f32 tiles in VMEM.
    # One fused VPU multiply-add per vreg; kernel is purely DMA-bound.
    w = w_ref[0, 0]
    b = b_ref[0, 0]
    o_ref[...] = x_ref[...] * w + b


def _affine_pallas_2d(x2, w2, b2, block_rows):
    rows, cols = x2.shape
    grid = (pl.cdiv(rows, block_rows),)   # non-divisible overhang block is masked
    return pl.pallas_call(
        _affine_kernel,
        out_shape=jax.ShapeDtypeStruct((rows, cols), jnp.float32),
        grid=grid,
        in_specs=[
            pl.BlockSpec(memory_space=pltpu.SMEM),               # w (1, 1) scalar
            pl.BlockSpec(memory_space=pltpu.SMEM),               # b (1, 1) scalar
            pl.BlockSpec((block_rows, cols), lambda i: (i, 0)),  # x row-tile
        ],
        out_specs=pl.BlockSpec((block_rows, cols), lambda i: (i, 0)),
        compiler_params=pltpu.CompilerParams(
            # v7x: shard row-tiles across the 2 TensorCores; neutral on v5e/v6e.
            # If profiling shows a single active TC on v7x, use pltpu.CORE_PARALLEL.
            dimension_semantics=("parallel",),
            vmem_limit_bytes=_VMEM_LIMIT_BYTES,
        ),
        cost_estimate=pl.CostEstimate(
            flops=2 * rows * cols,            # one mul + one add per element
            transcendentals=0,
            bytes_accessed=8 * rows * cols,   # f32 read + f32 write
        ),
    )(w2, b2, x2)


def linear_regression_forward(x, w, b, *, force_pallas=False, block_rows=_ROW_TILE):
    """Forward pass of nn.Linear(1, 1): y = x * w + b.

    x: (N, 1) float32   (same (batch, in_features=1) layout as PyTorch)
    w: (1, 1) float32   (PyTorch weight shape for Linear(1, 1))
    b: (1,)   float32   (PyTorch bias shape)
    returns: (N, 1) float32
    """
    orig_shape = x.shape
    x_flat = jnp.asarray(x, jnp.float32).reshape(-1)
    n = x_flat.shape[0]
    w2 = jnp.asarray(w, jnp.float32).reshape(1, 1)
    b2 = jnp.asarray(b, jnp.float32).reshape(1, 1)

    # Tiny problems: Pallas launch overhead dominates, let XLA fuse the affine.
    if n < _MIN_PALLAS_ELEMENTS and not force_pallas:
        return (x_flat * w2[0, 0] + b2[0, 0]).reshape(orig_shape)

    cols = _LANE_WIDTH
    rem = n % cols

    if rem == 0:
        # Copy-free common path: reshape of a contiguous buffer, no pad, no slice.
        rows = n // cols
        x2 = x_flat.reshape(rows, cols)
        y2 = _affine_pallas_2d(x2, w2, b2, min(block_rows, rows))
        return y2.reshape(orig_shape)

    # Tail path: pad only the final partial row (< 512 elements), slice it off
    # afterwards.  Padded inputs evaluate to `b` and are discarded.
    rows = n // cols + 1
    x2 = jnp.pad(x_flat, (0, rows * cols - n)).reshape(rows, cols)
    y2 = _affine_pallas_2d(x2, w2, b2, min(block_rows, rows))
    return y2.reshape(-1)[:n].reshape(orig_shape)


if __name__ == "__main__":
    key = jax.random.PRNGKey(0)
    k_x, k_w, k_b = jax.random.split(key, 3)

    # Deterministic parameters matching nn.Linear(1, 1) shapes.
    w = jax.random.uniform(k_w, (1, 1), minval=-1.0, maxval=1.0, dtype=jnp.float32)
    b = jax.random.uniform(k_b, (1,), minval=-1.0, maxval=1.0, dtype=jnp.float32)

    # 1) N divisible by 512: copy-free path (no pad, no output slice).
    n1 = 2048
    x1 = jax.random.normal(k_x, (n1, 1), dtype=jnp.float32)
    y1 = linear_regression_forward(x1, w, b, force_pallas=True)
    jax.block_until_ready(y1)
    y1_ref = x1 @ w.T + b
    assert y1.shape == (n1, 1)
    assert jnp.allclose(y1, y1_ref, atol=1e-6), "mismatch vs reference (n=2048)"

    # 2) Odd-sized batch: exercises the tail pad + slice-off path.
    n2 = 777
    x2 = jax.random.normal(jax.random.PRNGKey(1), (n2, 1), dtype=jnp.float32)
    y2 = linear_regression_forward(x2, w, b, force_pallas=True)
    jax.block_until_ready(y2)
    y2_ref = x2 @ w.T + b
    assert y2.shape == (n2, 1)
    assert jnp.allclose(y2, y2_ref, atol=1e-6), "mismatch vs reference (n=777)"

    # 3) Multi-block grid with a masked overhang block: 12 rows, block_rows=8
    #    -> grid = 2, last block only 4 valid rows (writes to rows 12..15 masked).
    n3 = 12 * _LANE_WIDTH
    x3 = jax.random.normal(jax.random.PRNGKey(2), (n3, 1), dtype=jnp.float32)
    y3 = linear_regression_forward(x3, w, b, force_pallas=True, block_rows=8)
    jax.block_until_ready(y3)
    y3_ref = x3 @ w.T + b
    assert y3.shape == (n3, 1)
    assert jnp.allclose(y3, y3_ref, atol=1e-6), "mismatch vs reference (n=6144)"

    print("KERNEL_OK")
</pallas_src>

<mosaic_0001>
module attributes {stable_mosaic.version = 11 : i64} {
  func.func @_affine_kernel(%arg0: i32, %arg1: memref<1x1xf32, #tpu.memory_space<smem>>, %arg2: memref<1x1xf32, #tpu.memory_space<smem>>, %arg3: memref<4x512xf32, #tpu.memory_space<vmem>>, %arg4: memref<4x512xf32, #tpu.memory_space<vmem>>) attributes {dimension_semantics = [#tpu.dimension_semantics<parallel>], iteration_bounds = array<i64: 1>, scalar_prefetch = 0 : i64, scratch_operands = 0 : i64, tpu.core_type = #tpu.core_type<tc>, window_params = [{transform_indices = @transform_0, window_bounds = array<i64: 1, 1>}, {transform_indices = @transform_1, window_bounds = array<i64: 1, 1>}, {transform_indices = @transform_2, window_bounds = array<i64: 4, 512>}, {transform_indices = @transform_3, window_bounds = array<i64: 4, 512>}]} {
    %c0 = arith.constant 0 : index
    %c0_0 = arith.constant 0 : index
    %0 = memref.load %arg1[%c0, %c0_0] : memref<1x1xf32, #tpu.memory_space<smem>>
    %c0_1 = arith.constant 0 : index
    %c0_2 = arith.constant 0 : index
    %1 = memref.load %arg2[%c0_1, %c0_2] : memref<1x1xf32, #tpu.memory_space<smem>>
    %c0_3 = arith.constant 0 : index
    %c0_4 = arith.constant 0 : index
    %2 = vector.load %arg3[%c0_3, %c0_4] : memref<4x512xf32, #tpu.memory_space<vmem>>, vector<4x512xf32>
    %3 = vector.broadcast %0 : f32 to vector<4x512xf32>
    %4 = arith.mulf %2, %3 : vector<4x512xf32>
    %5 = vector.broadcast %1 : f32 to vector<4x512xf32>
    %6 = arith.addf %4, %5 : vector<4x512xf32>
    %c0_5 = arith.constant 0 : index
    %c0_6 = arith.constant 0 : index
    %7 = vector.load %arg4[%c0_5, %c0_6] : memref<4x512xf32, #tpu.memory_space<vmem>>, vector<4x512xf32>
    tpu.vector_store %arg4[%c0_5, %c0_6], %6 {strides = array<i32>} : memref<4x512xf32, #tpu.memory_space<vmem>>, vector<4x512xf32>,
    return
  }
  func.func @transform_0(%arg0: i32) -> (i32, i32) {
    %c0_i32 = arith.constant 0 : i32
    %c0_i32_0 = arith.constant 0 : i32
    %c0_i32_1 = arith.constant 0 : i32
    return %c0_i32, %c0_i32_0 : i32, i32
  }
  func.func @transform_1(%arg0: i32) -> (i32, i32) {
    %c0_i32 = arith.constant 0 : i32
    %c0_i32_0 = arith.constant 0 : i32
    %c0_i32_1 = arith.constant 0 : i32
    return %c0_i32, %c0_i32_0 : i32, i32
  }
  func.func @transform_2(%arg0: i32) -> (i32, i32) {
    %c0_i32 = arith.constant 0 : i32
    %c0_i32_0 = arith.constant 0 : i32
    return %arg0, %c0_i32 : i32, i32
  }
  func.func @transform_3(%arg0: i32) -> (i32, i32) {
    %c0_i32 = arith.constant 0 : i32
    %c0_i32_0 = arith.constant 0 : i32
    return %arg0, %c0_i32 : i32, i32
  }
}

</mosaic_0001>

<llo_original>
// kernel: tpu_custom_call.1
$region0: #{tpu_custom_call.1}
  #allocation0 [shape = 'u32[]', space=smem, size = 0x4, offset = 0x4, fixed_abs, tag = 'smem constant byte address 0x4 - core index']
  #allocation1 [shape = 'u32[144,128]{1,0:T(1,128)}', space=vmem, size = 0x12000, scoped, tag = 'internal scratch']
  #allocation2 [shape = 'f32[1,1]{1,0:T(1,128)S(6)}', space=smem, size = 0x200, scoped, tag = 'scoped memory for tpu_custom_call.1']
  #allocation3 [shape = 'f32[1,1]{1,0:T(1,128)S(6)}', space=smem, size = 0x200, scoped, tag = 'scoped memory for tpu_custom_call.1']
  %s0 = inlined_call_operand.<no memory space> [shape: f32[1,1], index: 0, kind: input, shape index: {}]
  %s1 = inlined_call_operand.<no memory space> [shape: f32[1,1], index: 1, kind: input, shape index: {}]
  %s2 = inlined_call_operand.hbm [shape: f32[4,512], index: 2, kind: input, shape index: {}]
  %s3 = inlined_call_operand.hbm [shape: f32[4,512], index: 3, kind: output, shape index: {}]
  %s4 = sld [smem:[#allocation0]]
  $region26: #{tpu_custom_call.1} parent=0
    _
  %s6 = ssub.s32 1, %s4
  %s7 = scalar_select 0, %s6, %s4
  %8 = sst [smem:[#allocation2]] %s0
  %9 = sst [smem:[#allocation3]] %s1
  $region1: #{tpu_custom_call.1} parent=0
    #allocation4 [shape = 'u8[8192]{0}', space=vmem, size = 0x2000, scoped, tag = 'input window, operand 2, single buffered']
    #allocation5 [shape = 's32[1]{0}', space=sflag, size = 0x4, scoped, tag = 'scoped memory for tpu_custom_call.1']
    #allocation6 [shape = 's32[1]{0}', space=sflag, size = 0x4, scoped, tag = 'scoped memory for tpu_custom_call.1']
    #allocation7 [shape = 'u8[8192]{0}', space=vmem, size = 0x2000, scoped, tag = 'output window, operand 0, single buffered']
    %10 = vsyncpa [#allocation5], 0
    %11 = vsyncpa [#allocation6], 0
    // Predicated region
    $region2: #{tpu_custom_call.1} parent=1 // pred_check
      _
    $region3: #{tpu_custom_call.1} parent=1 // pred_check_branch
      %13 = sbr.rel (0) target = $region5
    $region4: #{tpu_custom_call.1} parent=1 // pred_region
      _
    $region5: #{tpu_custom_call.1} parent=1 // pred_fallthru
      _
    // Predicated region
    $region6: #{tpu_custom_call.1} parent=1 // pred_check
      _
    $region7: #{tpu_custom_call.1} parent=1 // pred_check_branch
      %15 = sbr.rel (0) target = $region9
    $region8: #{tpu_custom_call.1} parent=1 // pred_region
      _
    $region9: #{tpu_custom_call.1} parent=1 // pred_fallthru
      _
    // Predicated region
    $region10: #{tpu_custom_call.1} parent=1 // pred_check
      _
    $region11: #{tpu_custom_call.1} parent=1 // pred_check_branch
      %17 = sbr.rel (0) target = $region13
    $region12: #{tpu_custom_call.1} parent=1 // pred_region
      %s19 = ssub.s32 256, 256
      %20 = vsyncadd [#allocation5], %s19
      %s22 = sshll.u32 [#allocation4], 4
      %s23 = int_to_ptr.vmem [resolvable:$true] %s22
      %25 = dma.hbm_to_vmem [thread:$0]  %s2, 256, %s23, [#allocation5]
    $region13: #{tpu_custom_call.1} parent=1 // pred_fallthru
      _
    // Predicated region
    $region14: #{tpu_custom_call.1} parent=1 // pred_check
      _
    $region15: #{tpu_custom_call.1} parent=1 // pred_check_branch
      %27 = sbr.rel (0) target = $region17
    $region16: #{tpu_custom_call.1} parent=1 // pred_region
      %28 = dma.done [#allocation5], 256
    $region17: #{tpu_custom_call.1} parent=1 // pred_fallthru
      _
    %s29 = sld [smem:[#allocation2]]
    %s30 = sld [smem:[#allocation3]]
    %v31 = vld [vmem:[#allocation4] sm:$0xff]
    %v32 = vld [vmem:[#allocation4 + $0x8] sm:$0xff]
    %v33 = vstv %s29
    %v34 = vmul.f32 %v31, %v33
    %v35 = vmul.f32 %v32, %v33
    %v36 = vstv %s30
    %v37 = vadd.f32 %v34, %v36
    %v38 = vadd.f32 %v35, %v36
    %39 = vst [vmem:[#allocation7] sm:$0xff] %v37
    %40 = vst [vmem:[#allocation7 + $0x8] sm:$0xff] %v38
    // Predicated region
    $region18: #{tpu_custom_call.1} parent=1 // pred_check
      _
    $region19: #{tpu_custom_call.1} parent=1 // pred_check_branch
      %42 = sbr.rel (0) target = $region21
    $region20: #{tpu_custom_call.1} parent=1 // pred_region
      %s44 = ssub.s32 256, 256
      %45 = vsyncadd [#allocation6], %s44
      %s47 = sshll.u32 [#allocation7], 4
      %s48 = int_to_ptr.vmem [resolvable:$true] %s47
      %50 = dma.vmem_to_hbm [thread:$0]  %s48, 256, %s3, [#allocation6]
    $region21: #{tpu_custom_call.1} parent=1 // pred_fallthru
      _
    // Predicated region
    $region22: #{tpu_custom_call.1} parent=1 // pred_check
      _
    $region23: #{tpu_custom_call.1} parent=1 // pred_check_branch
      %52 = sbr.rel (0) target = $region25
    $region24: #{tpu_custom_call.1} parent=1 // pred_region
      %53 = dma.done [#allocation6], 256
    $region25: #{tpu_custom_call.1} parent=1 // pred_fallthru
      _
    %54 = vsyncpa [#allocation5], 1
    %55 = vsyncpa [#allocation6], 1

</llo_original>
